<compile_context>
chip_gen: v6e
topology: v6e:2x2x1
jax: 0.10.0
libtpu: 0.0.40
codegen_flags: <defaults>
</compile_context>

<pallas_src>
import functools
import math

import jax
import jax.numpy as jnp
from jax import lax
from jax.experimental import pallas as pl
from jax.experimental.pallas import tpu as pltpu

_MIB = 1 << 20


# ----------------------------------------------------------------------------
# Gaussian taps (mirrors the PyTorch __init__). The module's normalized 2-D
# kernel equals the outer product of these normalized 1-D taps (separable).
# ----------------------------------------------------------------------------
def gaussian_taps_1d(kernel_size: int = 3, sigma=None):
    if sigma is None:
        sigma = kernel_size // 2 * 2 / 6.0
    mean = (kernel_size - 1) / 2.0
    # NOTE: reproduces the reference formula exp(-((x - mean) / (2*std))**2).
    vals = [
        (1.0 / (sigma * math.sqrt(2.0 * math.pi)))
        * math.exp(-(((i - mean) / (2.0 * sigma)) ** 2))
        for i in range(kernel_size)
    ]
    total = sum(vals)
    return [v / total for v in vals]


# ----------------------------------------------------------------------------
# Main kernel (HW multiple of 128): roll-based shifts, no scratch.
# ----------------------------------------------------------------------------
def _gauss_roll_kernel(x_ref, o_ref, *, H, W, taps):
    # x_ref/o_ref: (TB, H*W) - each sublane row is one flattened (H, W) plane.
    K = len(taps)
    pad = K // 2
    HW = H * W

    # TODO(synk): on v6e/v7x keep bf16 operands (f32 accumulate only) when the
    # input is bf16; v5e has no bf16 VPU so full f32 stays the default.
    x = x_ref[...].astype(jnp.float32)

    pos = lax.broadcasted_iota(jnp.int32, (1, HW), 1)
    col = pos % W

    # ---- vertical (Kx1) pass: neighbour rows live at lane offsets dy*W.
    #      Zero padding folded into a single tap*mask multiplier per tap
    #      (single-sided test: bottom rows for dy>0, top rows for dy<0). ----
    v = taps[pad] * x
    for t in range(K):
        dy = t - pad
        if dy == 0:
            continue
        d = dy * W
        rolled = pltpu.roll(x, (-d) % HW, 1)   # rolled[:, p] == x[:, p + d] (wrapped)
        if dy > 0:
            mult = jnp.where(pos < HW - d, taps[t], 0.0)
        else:
            mult = jnp.where(pos >= -d, taps[t], 0.0)
        v = v + rolled * mult

    # ---- horizontal (1xK) pass: neighbour cols at lane offsets dx; mask lanes
    #      whose neighbour would wrap across a row boundary (zero padding). ----
    out = taps[pad] * v
    for t in range(K):
        dx = t - pad
        if dx == 0:
            continue
        rolled = pltpu.roll(v, (-dx) % HW, 1)
        if dx > 0:
            mult = jnp.where(col < W - dx, taps[t], 0.0)
        else:
            mult = jnp.where(col >= -dx, taps[t], 0.0)
        out = out + rolled * mult

    o_ref[...] = out.astype(o_ref.dtype)


# ----------------------------------------------------------------------------
# Fallback kernel (HW not a multiple of 128): zero-haloed VMEM scratch. The
# left halo is rounded up to 128 lanes so the central stores start aligned.
# ----------------------------------------------------------------------------
def _gauss_scratch_kernel(x_ref, o_ref, s_ref, *, H, W, taps, left):
    K = len(taps)
    pad = K // 2
    HW = H * W
    tb = x_ref.shape[0]
    s_w = s_ref.shape[1]
    right = s_w - left - HW

    # Zero the padding halos (cheap; done every step so it is megacore-safe).
    s_ref[:, :left] = jnp.zeros((tb, left), jnp.float32)
    s_ref[:, left + HW:] = jnp.zeros((tb, right), jnp.float32)

    x = x_ref[...].astype(jnp.float32)
    col = lax.broadcasted_iota(jnp.int32, (1, HW), 1) % W

    # Vertical pass: zero halos supply top/bottom padding, no mask needed.
    s_ref[:, left:left + HW] = x          # `left` is a multiple of 128 -> aligned start
    v = taps[pad] * x
    for t in range(K):
        dy = t - pad
        if dy == 0:
            continue
        off = left + dy * W
        v = v + taps[t] * s_ref[:, off:off + HW]

    # Horizontal pass: mask lanes whose neighbour wraps across a row boundary.
    s_ref[:, left:left + HW] = v
    out = taps[pad] * v
    for t in range(K):
        dx = t - pad
        if dx == 0:
            continue
        shifted = s_ref[:, left + dx:left + dx + HW]
        if dx > 0:
            mult = jnp.where(col < W - dx, taps[t], 0.0)
        else:
            mult = jnp.where(col >= -dx, taps[t], 0.0)
        out = out + shifted * mult

    o_ref[...] = out.astype(o_ref.dtype)


# ----------------------------------------------------------------------------
# Tiling plan: TB (planes per grid step), grid length, scoped-VMEM limit.
# ----------------------------------------------------------------------------
def _vmem_capacity_bytes() -> int:
    try:
        return int(pltpu.get_tpu_info().vmem_capacity_bytes)
    except Exception:
        return 64 * _MIB   # conservative (v7x-sized) fallback


def _sublane_multiple(itemsize: int) -> int:
    # f32 -> 8, bf16 -> 16, int8/fp8 -> 32
    return max(8, 32 // max(1, itemsize))


def _plan(n_planes: int, hw: int, itemsize: int, scratch_lanes: int):
    vmem_total = _vmem_capacity_bytes()
    # Per-step working-set budget (2x double-buffered input + 2x output + f32
    # scratch / live temps): ~56 MiB on v5e/v6e (128 MiB physical VMEM),
    # ~24 MiB on v7x (64 MiB per TensorCore).
    budget = min(64 * _MIB, max(16 * _MIB, vmem_total // 2 - 8 * _MIB))
    per_plane = 4 * hw * itemsize + 4 * scratch_lanes + 8 * hw
    sub = _sublane_multiple(itemsize)

    # Minimum grid steps: >=4 (two per TensorCore on v7x) for big arrays,
    # >=2 for double-buffer overlap on moderate ones, 1 for tiny inputs.
    total_bytes = n_planes * hw * itemsize
    if total_bytes >= 16 * _MIB:
        min_steps = 4
    elif total_bytes >= 2 * _MIB:
        min_steps = 2
    else:
        min_steps = 1

    tb = min(n_planes, max(1, budget // per_plane), pl.cdiv(n_planes, min_steps))
    if tb < n_planes:
        # Tiled path: sublane-multiple blocks; ragged last block handled by cdiv grid.
        tb = max(sub, tb // sub * sub)
    steps = pl.cdiv(n_planes, tb)

    # Prefer an even step count so dimension_semantics=("parallel",) splits
    # evenly across v7x's two TensorCores.
    if steps >= 3 and steps % 2 == 1 and tb > sub:
        alt = max(sub, pl.cdiv(n_planes, steps + 1) // sub * sub)
        if alt < tb and pl.cdiv(n_planes, alt) % 2 == 0:
            tb, steps = alt, pl.cdiv(n_planes, alt)

    working_set = tb * per_plane
    vmem_limit = int(min(vmem_total - 2 * _MIB, max(32 * _MIB, working_set + 16 * _MIB)))
    return tb, steps, vmem_limit


# ----------------------------------------------------------------------------
# Public wrapper: depthwise Gaussian blur on NCHW, padding=K//2 (zeros).
# Matches GaussianSmoothing.forward for dim=2.
# ----------------------------------------------------------------------------
def gaussian_smoothing(x, kernel_size: int = 3, sigma=None):
    B, C, H, W = x.shape
    K = int(kernel_size)
    assert K % 2 == 1, "odd kernel_size expected (module uses padding=K//2)"
    taps = tuple(gaussian_taps_1d(K, sigma))   # Python floats -> baked-in constants
    pad = K // 2
    N, HW = B * C, H * W

    x2 = x.reshape(N, HW)   # contiguous-dim merge: free, no extra HBM copy

    use_roll = (HW % 128) == 0
    if use_roll:
        scratch_lanes = 0
        kernel = functools.partial(_gauss_roll_kernel, H=H, W=W, taps=taps)
    else:
        # TODO(synk): for HW % 128 != 0 (e.g. 28x28, 7x7) pad HW up to a multiple
        # of 128 in the (N, HW) layout so output stores stay lane-dense.
        left = ((pad * W + 127) // 128) * 128   # 128-aligned left halo
        scratch_lanes = left + HW + pad * W
        kernel = functools.partial(
            _gauss_scratch_kernel, H=H, W=W, taps=taps, left=left)

    TB, steps, vmem_limit = _plan(N, HW, x.dtype.itemsize, scratch_lanes)
    scratch = [] if use_roll else [pltpu.VMEM((TB, scratch_lanes), jnp.float32)]

    out = pl.pallas_call(
        kernel,
        out_shape=jax.ShapeDtypeStruct((N, HW), x.dtype),
        grid_spec=pltpu.PrefetchScalarGridSpec(
            num_scalar_prefetch=0,
            grid=(steps,),
            in_specs=[pl.BlockSpec((TB, HW), lambda i: (i, 0))],
            out_specs=pl.BlockSpec((TB, HW), lambda i: (i, 0)),
            scratch_shapes=scratch,
        ),
        compiler_params=pltpu.CompilerParams(
            dimension_semantics=("parallel",),
            vmem_limit_bytes=vmem_limit,
        ),
        cost_estimate=pl.CostEstimate(
            flops=4 * K * N * HW,                       # separable: ~2K MACs/element
            transcendentals=0,
            bytes_accessed=2 * N * HW * x.dtype.itemsize,
        ),
    )(x2)
    return out.reshape(B, C, H, W)


# ----------------------------------------------------------------------------
# Pure-JAX reference (depthwise conv, same weights) for a correctness check.
# ----------------------------------------------------------------------------
def _reference(x, kernel_size: int = 3, sigma=None):
    B, C, H, W = x.shape
    K = kernel_size
    g = jnp.asarray(gaussian_taps_1d(K, sigma), dtype=jnp.float32)
    w2d = jnp.outer(g, g)   # == the module's normalized 2-D kernel
    w = jnp.broadcast_to(w2d, (C, K, K)).reshape(C, 1, K, K)
    out = lax.conv_general_dilated(
        x.astype(jnp.float32),
        w,
        window_strides=(1, 1),
        padding=[(K // 2, K // 2), (K // 2, K // 2)],
        dimension_numbers=("NCHW", "OIHW", "NCHW"),
        feature_group_count=C,
    )
    return out.astype(x.dtype)


if __name__ == "__main__":
    B, C, H, W = 2, 4, 16, 16
    KSIZE = 3

    key = jax.random.PRNGKey(0)
    x = jax.random.normal(key, (B, C, H, W), dtype=jnp.float32)

    out = gaussian_smoothing(x, kernel_size=KSIZE, sigma=None)
    out = jax.block_until_ready(out)

    ref = _reference(x, kernel_size=KSIZE, sigma=None)
    assert out.shape == (B, C, H, W)
    assert jnp.allclose(out, ref, atol=1e-5, rtol=1e-5), "mismatch vs reference depthwise conv"

    print("KERNEL_OK")
</pallas_src>

<mosaic_0001>
module attributes {stable_mosaic.version = 11 : i64} {
  func.func @_gauss_roll_kernel(%arg0: i32, %arg1: memref<8x256xf32, #tpu.memory_space<vmem>>, %arg2: memref<8x256xf32, #tpu.memory_space<vmem>>) attributes {dimension_semantics = [#tpu.dimension_semantics<parallel>], iteration_bounds = array<i64: 1>, scalar_prefetch = 0 : i64, scratch_operands = 0 : i64, tpu.core_type = #tpu.core_type<tc>, window_params = [{transform_indices = @transform_0, window_bounds = array<i64: 8, 256>}, {transform_indices = @transform_1, window_bounds = array<i64: 8, 256>}]} {
    %c0 = arith.constant 0 : index
    %c0_0 = arith.constant 0 : index
    %0 = vector.load %arg1[%c0, %c0_0] : memref<8x256xf32, #tpu.memory_space<vmem>>, vector<8x256xf32>
    %1 = tpu.iota {dimensions = array<i32: 1>} : vector<1x256xi32>
    %c16_i32 = arith.constant 16 : i32
    %c0_i32 = arith.constant 0 : i32
    %2 = arith.cmpi eq, %c16_i32, %c0_i32 : i32
    %c1_i32 = arith.constant 1 : i32
    %3 = arith.select %2, %c1_i32, %c16_i32 : i32
    %4 = vector.broadcast %3 : i32 to vector<1x256xi32>
    %5 = arith.remsi %1, %4 : vector<1x256xi32>
    %c0_i32_1 = arith.constant 0 : i32
    %6 = vector.broadcast %c0_i32_1 : i32 to vector<1x256xi32>
    %7 = arith.cmpi ne, %5, %6 : vector<1x256xi32>
    %c0_i32_2 = arith.constant 0 : i32
    %8 = vector.broadcast %c0_i32_2 : i32 to vector<1x256xi32>
    %9 = arith.cmpi slt, %5, %8 : vector<1x256xi32>
    %c0_i32_3 = arith.constant 0 : i32
    %10 = arith.cmpi slt, %3, %c0_i32_3 : i32
    %11 = vector.broadcast %10 : i1 to vector<1x256xi1>
    %12 = vector.broadcast %11 : vector<1x256xi1> to vector<1x256xi1>
    %13 = arith.xori %9, %12 : vector<1x256xi1>
    %14 = arith.andi %13, %7 : vector<1x256xi1>
    %15 = vector.broadcast %3 : i32 to vector<1x256xi32>
    %16 = arith.addi %5, %15 : vector<1x256xi32>
    %17 = arith.select %14, %16, %5 : vector<1x256xi1>, vector<1x256xi32>
    %cst = arith.constant 0.82590127 : f32
    %18 = vector.broadcast %cst : f32 to vector<8x256xf32>
    %19 = arith.mulf %18, %0 : vector<8x256xf32>
    %c16_i32_4 = arith.constant 16 : i32
    %20 = tpu.dynamic_rotate %0 by %c16_i32_4 dim 1 : vector<8x256xf32>, i32 -> vector<8x256xf32>
    %c16_i32_5 = arith.constant 16 : i32
    %21 = vector.broadcast %c16_i32_5 : i32 to vector<1x256xi32>
    %22 = arith.cmpi sge, %1, %21 : vector<1x256xi32>
    %cst_6 = arith.constant 0.0870493575 : f32
    %cst_7 = arith.constant 0.000000e+00 : f32
    %23 = vector.broadcast %cst_6 : f32 to vector<1x256xf32>
    %24 = vector.broadcast %cst_7 : f32 to vector<1x256xf32>
    %25 = arith.select %22, %23, %24 : vector<1x256xi1>, vector<1x256xf32>
    %26 = vector.broadcast %25 : vector<1x256xf32> to vector<8x256xf32>
    %27 = arith.mulf %20, %26 : vector<8x256xf32>
    %28 = arith.addf %19, %27 : vector<8x256xf32>
    %c240_i32 = arith.constant 240 : i32
    %29 = tpu.dynamic_rotate %0 by %c240_i32 dim 1 : vector<8x256xf32>, i32 -> vector<8x256xf32>
    %c240_i32_8 = arith.constant 240 : i32
    %30 = vector.broadcast %c240_i32_8 : i32 to vector<1x256xi32>
    %31 = arith.cmpi slt, %1, %30 : vector<1x256xi32>
    %cst_9 = arith.constant 0.0870493575 : f32
    %cst_10 = arith.constant 0.000000e+00 : f32
    %32 = vector.broadcast %cst_9 : f32 to vector<1x256xf32>
    %33 = vector.broadcast %cst_10 : f32 to vector<1x256xf32>
    %34 = arith.select %31, %32, %33 : vector<1x256xi1>, vector<1x256xf32>
    %35 = vector.broadcast %34 : vector<1x256xf32> to vector<8x256xf32>
    %36 = arith.mulf %29, %35 : vector<8x256xf32>
    %37 = arith.addf %28, %36 : vector<8x256xf32>
    %cst_11 = arith.constant 0.82590127 : f32
    %38 = vector.broadcast %cst_11 : f32 to vector<8x256xf32>
    %39 = arith.mulf %38, %37 : vector<8x256xf32>
    %c1_i32_12 = arith.constant 1 : i32
    %40 = tpu.dynamic_rotate %37 by %c1_i32_12 dim 1 : vector<8x256xf32>, i32 -> vector<8x256xf32>
    %c1_i32_13 = arith.constant 1 : i32
    %41 = vector.broadcast %c1_i32_13 : i32 to vector<1x256xi32>
    %42 = arith.cmpi sge, %17, %41 : vector<1x256xi32>
    %cst_14 = arith.constant 0.0870493575 : f32
    %cst_15 = arith.constant 0.000000e+00 : f32
    %43 = vector.broadcast %cst_14 : f32 to vector<1x256xf32>
    %44 = vector.broadcast %cst_15 : f32 to vector<1x256xf32>
    %45 = arith.select %42, %43, %44 : vector<1x256xi1>, vector<1x256xf32>
    %46 = vector.broadcast %45 : vector<1x256xf32> to vector<8x256xf32>
    %47 = arith.mulf %40, %46 : vector<8x256xf32>
    %48 = arith.addf %39, %47 : vector<8x256xf32>
    %c255_i32 = arith.constant 255 : i32
    %49 = tpu.dynamic_rotate %37 by %c255_i32 dim 1 : vector<8x256xf32>, i32 -> vector<8x256xf32>
    %c15_i32 = arith.constant 15 : i32
    %50 = vector.broadcast %c15_i32 : i32 to vector<1x256xi32>
    %51 = arith.cmpi slt, %17, %50 : vector<1x256xi32>
    %cst_16 = arith.constant 0.0870493575 : f32
    %cst_17 = arith.constant 0.000000e+00 : f32
    %52 = vector.broadcast %cst_16 : f32 to vector<1x256xf32>
    %53 = vector.broadcast %cst_17 : f32 to vector<1x256xf32>
    %54 = arith.select %51, %52, %53 : vector<1x256xi1>, vector<1x256xf32>
    %55 = vector.broadcast %54 : vector<1x256xf32> to vector<8x256xf32>
    %56 = arith.mulf %49, %55 : vector<8x256xf32>
    %57 = arith.addf %48, %56 : vector<8x256xf32>
    %c0_18 = arith.constant 0 : index
    %c0_19 = arith.constant 0 : index
    %58 = vector.load %arg2[%c0_18, %c0_19] : memref<8x256xf32, #tpu.memory_space<vmem>>, vector<8x256xf32>
    tpu.vector_store %arg2[%c0_18, %c0_19], %57 {strides = array<i32>} : memref<8x256xf32, #tpu.memory_space<vmem>>, vector<8x256xf32>,
    return
  }
  func.func @transform_0(%arg0: i32) -> (i32, i32) {
    %c0_i32 = arith.constant 0 : i32
    %c0_i32_0 = arith.constant 0 : i32
    return %arg0, %c0_i32 : i32, i32
  }
  func.func @transform_1(%arg0: i32) -> (i32, i32) {
    %c0_i32 = arith.constant 0 : i32
    %c0_i32_0 = arith.constant 0 : i32
    return %arg0, %c0_i32 : i32, i32
  }
}

</mosaic_0001>

<llo_original>
// kernel: tpu_custom_call.1
$region0: #{tpu_custom_call.1}
  #allocation0 [shape = 'u32[]', space=smem, size = 0x4, offset = 0x4, fixed_abs, tag = 'smem constant byte address 0x4 - core index']
  #allocation1 [shape = 'u32[144,128]{1,0:T(1,128)}', space=vmem, size = 0x12000, scoped, tag = 'internal scratch']
  %s0 = inlined_call_operand.hbm [shape: f32[8,256], index: 0, kind: input, shape index: {}]
  %s1 = inlined_call_operand.hbm [shape: f32[8,256], index: 1, kind: output, shape index: {}]
  %s2 = sld [smem:[#allocation0]]
  $region18: #{tpu_custom_call.1} parent=0
    _
  %s4 = ssub.s32 1, %s2
  %s5 = scalar_select 0, %s4, %s2
  $region1: #{tpu_custom_call.1} parent=0
    #allocation2 [shape = 'u8[8192]{0}', space=vmem, size = 0x2000, scoped, tag = 'input window, operand 0, single buffered']
    #allocation3 [shape = 's32[1]{0}', space=sflag, size = 0x4, scoped, tag = 'scoped memory for tpu_custom_call.1']
    #allocation4 [shape = 's32[1]{0}', space=sflag, size = 0x4, scoped, tag = 'scoped memory for tpu_custom_call.1']
    #allocation5 [shape = 'u8[8192]{0}', space=vmem, size = 0x2000, scoped, tag = 'output window, operand 0, single buffered']
    %6 = vsyncpa [#allocation3], 0
    %7 = vsyncpa [#allocation4], 0
    // Predicated region
    $region2: #{tpu_custom_call.1} parent=1 // pred_check
      _
    $region3: #{tpu_custom_call.1} parent=1 // pred_check_branch
      %9 = sbr.rel (0) target = $region5
    $region4: #{tpu_custom_call.1} parent=1 // pred_region
      %s11 = ssub.s32 256, 256
      %12 = vsyncadd [#allocation3], %s11
      %s14 = sshll.u32 [#allocation2], 4
      %s15 = int_to_ptr.vmem [resolvable:$true] %s14
      %17 = dma.hbm_to_vmem [thread:$0]  %s0, 256, %s15, [#allocation3]
    $region5: #{tpu_custom_call.1} parent=1 // pred_fallthru
      _
    // Predicated region
    $region6: #{tpu_custom_call.1} parent=1 // pred_check
      _
    $region7: #{tpu_custom_call.1} parent=1 // pred_check_branch
      %19 = sbr.rel (0) target = $region9
    $region8: #{tpu_custom_call.1} parent=1 // pred_region
      %20 = dma.done [#allocation3], 256
    $region9: #{tpu_custom_call.1} parent=1 // pred_fallthru
      _
    %v21 = vld [vmem:[#allocation2] sm:$0xff]
    %v22 = vld [vmem:[#allocation2 + $0x8] sm:$0xff]
    %v23 = vlaneseq
    %v24 = vand.u32 %v23, 127
    %v25 = vadd.s32 %v24, 128
    %vm26 = vcmp.lt.s32.totalorder %v24, 0
    %v27 = vsub.s32 0, %v24
    %v28 = vsel %vm26, %v27, %v24
    %v29 = vshrl.u32 %v28, 4
    %v30 = vand.u32 %v28, 15
    %v31 = vsub.s32 0, %v30
    %v32 = vsel %vm26, %v31, %v30
    %vm33 = vcmp.lt.s32.totalorder %v25, 0
    %v34 = vsub.s32 0, %v25
    %v35 = vsel %vm33, %v34, %v25
    %v36 = vshrl.u32 %v35, 4
    %v37 = vand.u32 %v35, 15
    %v38 = vsub.s32 0, %v37
    %v39 = vsel %vm33, %v38, %v37
    %vm40 = vcmp.ne.s32.totalorder %v32, 0
    %vm41 = vcmp.ne.s32.totalorder %v39, 0
    %vm42 = vcmp.lt.s32.totalorder %v32, 0
    %vm43 = vcmp.lt.s32.totalorder %v39, 0
    %vm44 = vmand %vm42, %vm40
    %vm45 = vmand %vm43, %vm41
    %v46 = vadd.s32 %v32, 16
    %v47 = vadd.s32 %v39, 16
    %v48 = vsel %vm44, %v46, %v32
    %v49 = vsel %vm45, %v47, %v39
    %v50 = vmul.f32 %v21, 0.82590127
    %v51 = vmul.f32 %v22, 0.82590127
    %52 = vrot.lane.b32.xlu0 %v21, 16
    %v53 = vpop.permute.xlu0 %52
    %54 = vrot.lane.b32.xlu0 %v22, 16
    %v55 = vpop.permute.xlu0 %54
    %vm56 = vcmp.lt.s32.totalorder %v24, 16
    %v57 = vsel %vm56, %v53, %v55
    %v58 = vsel %vm56, %v55, %v53
    %vm59 = vcmp.ge.s32.totalorder %v24, 16
    %vm60 = vcmp.ge.s32.totalorder %v25, 16
    %v61 = vsel %vm59, 0.08704936, 0.0
    %v62 = vsel %vm60, 0.08704936, 0.0
    %v63 = vmul.f32 %v58, %v61
    %v64 = vmul.f32 %v57, %v62
    %v65 = vadd.f32 %v50, %v63
    %v66 = vadd.f32 %v51, %v64
    %67 = vrot.lane.b32.xlu0 %v21, 112
    %v68 = vpop.permute.xlu0 %67
    %69 = vrot.lane.b32.xlu0 %v22, 112
    %v70 = vpop.permute.xlu0 %69
    %vm71 = vcmp.lt.s32.totalorder %v24, 112
    %v72 = vsel %vm71, %v68, %v70
    %v73 = vsel %vm71, %v70, %v68
    %vm74 = vcmp.lt.s32.totalorder %v24, 240
    %vm75 = vcmp.lt.s32.totalorder %v25, 240
    %v76 = vsel %vm74, 0.08704936, 0.0
    %v77 = vsel %vm75, 0.08704936, 0.0
    %v78 = vmul.f32 %v72, %v76
    %v79 = vmul.f32 %v73, %v77
    %v80 = vadd.f32 %v65, %v78
    %v81 = vadd.f32 %v66, %v79
    %v82 = vmul.f32 %v80, 0.82590127
    %v83 = vmul.f32 %v81, 0.82590127
    %84 = vrot.lane.b32.xlu0 %v80, 1
    %v85 = vpop.permute.xlu0 %84
    %86 = vrot.lane.b32.xlu0 %v81, 1
    %v87 = vpop.permute.xlu0 %86
    %vm88 = vcmp.lt.s32.totalorder %v24, 1
    %v89 = vsel %vm88, %v85, %v87
    %v90 = vsel %vm88, %v87, %v85
    %vm91 = vcmp.ge.s32.totalorder %v48, 1
    %vm92 = vcmp.ge.s32.totalorder %v49, 1
    %v93 = vsel %vm91, 0.08704936, 0.0
    %v94 = vsel %vm92, 0.08704936, 0.0
    %v95 = vmul.f32 %v90, %v93
    %v96 = vmul.f32 %v89, %v94
    %v97 = vadd.f32 %v82, %v95
    %v98 = vadd.f32 %v83, %v96
    %99 = vrot.lane.b32.xlu0 %v80, 127
    %v100 = vpop.permute.xlu0 %99
    %101 = vrot.lane.b32.xlu0 %v81, 127
    %v102 = vpop.permute.xlu0 %101
    %vm103 = vcmp.lt.s32.totalorder %v24, 127
    %v104 = vsel %vm103, %v100, %v102
    %v105 = vsel %vm103, %v102, %v100
    %vm106 = vcmp.lt.s32.totalorder %v48, 15
    %vm107 = vcmp.lt.s32.totalorder %v49, 15
    %v108 = vsel %vm106, 0.08704936, 0.0
    %v109 = vsel %vm107, 0.08704936, 0.0
    %v110 = vmul.f32 %v104, %v108
    %v111 = vmul.f32 %v105, %v109
    %v112 = vadd.f32 %v97, %v110
    %v113 = vadd.f32 %v98, %v111
    %114 = vst [vmem:[#allocation5] sm:$0xff] %v112
    %115 = vst [vmem:[#allocation5 + $0x8] sm:$0xff] %v113
    // Predicated region
    $region10: #{tpu_custom_call.1} parent=1 // pred_check
      _
    $region11: #{tpu_custom_call.1} parent=1 // pred_check_branch
      %117 = sbr.rel (0) target = $region13
    $region12: #{tpu_custom_call.1} parent=1 // pred_region
      %s119 = ssub.s32 256, 256
      %120 = vsyncadd [#allocation4], %s119
      %s122 = sshll.u32 [#allocation5], 4
      %s123 = int_to_ptr.vmem [resolvable:$true] %s122
      %125 = dma.vmem_to_hbm [thread:$0]  %s123, 256, %s1, [#allocation4]
    $region13: #{tpu_custom_call.1} parent=1 // pred_fallthru
      _
    // Predicated region
    $region14: #{tpu_custom_call.1} parent=1 // pred_check
      _
    $region15: #{tpu_custom_call.1} parent=1 // pred_check_branch
      %127 = sbr.rel (0) target = $region17
    $region16: #{tpu_custom_call.1} parent=1 // pred_region
      %128 = dma.done [#allocation4], 256
    $region17: #{tpu_custom_call.1} parent=1 // pred_fallthru
      _
    %129 = vsyncpa [#allocation3], 1
    %130 = vsyncpa [#allocation4], 1

</llo_original>
